<compile_context>
chip_gen: v6e
topology: v6e:2x2x1
jax: 0.10.0
libtpu: 0.0.40
codegen_flags: <defaults>
</compile_context>

<pallas_src>
import jax
import jax.numpy as jnp
from jax.experimental import pallas as pl
from jax.experimental.pallas import tpu as pltpu


def _normalize_kernel(scale_ref, bias_ref, x_ref, o_ref):
    # scale_ref / bias_ref: VMEM (row_tile, 1) f32 per-row params (broadcast
    # across the lane dim).  x_ref / o_ref: VMEM (row_tile, col_tile) tiles.
    x = x_ref[...].astype(jnp.float32)
    o_ref[...] = (x * scale_ref[...] + bias_ref[...]).astype(o_ref.dtype)


def _round_up(x, m):
    return ((x + m - 1) // m) * m


def _largest_aligned_divisor(dim, align, max_tile):
    """Largest divisor of `dim` that is a multiple of `align` and <= max_tile."""
    best = None
    for t in range(align, min(dim, max_tile) + 1, align):
        if dim % t == 0:
            best = t
    return best


def _device_kind():
    try:
        return jax.devices()[0].device_kind.lower()
    except Exception:  # pragma: no cover - defensive
        return ""


def _tile_budget_bytes(kind):
    # Per-x-tile byte budget.  Total VMEM ~= 4x this (in/out double-buffered)
    # plus small padded param blocks:
    #   v5e : 2 MiB/tile -> ~8 MiB  (scoped default 16 MiB)
    #   v6e : 4 MiB/tile -> ~16 MiB (scoped default 32 MiB)
    #   v7x : 4 MiB/tile -> ~16 MiB (scoped default 32 MiB, 64 MiB physical)
    if "v6" in kind or "v7" in kind:
        return 4 << 20
    return 2 << 20


def _pick_tiles(R_pad, L_pad, itemsize, sublane_align, budget_bytes, kind):
    # Prefer full-width rows: contiguous HBM bursts and the widest possible
    # unmasked stores.  Only split columns if even `sublane_align` full rows
    # blow the budget.
    if L_pad * itemsize * sublane_align <= budget_bytes:
        col_tile = L_pad
    else:
        col_cap_elems = max(128, budget_bytes // (itemsize * sublane_align))
        col_cap = max(128, (col_cap_elems // 128) * 128)
        col_tile = _largest_aligned_divisor(L_pad, 128, col_cap) or 128

    # Row tile: fill the remaining budget.  Each row costs col_tile*itemsize
    # for x plus 2 params x 128 lanes x 4 B of lane-padded VMEM.
    bytes_per_row = col_tile * itemsize + 2 * 128 * 4
    max_rows = max(sublane_align, budget_bytes // bytes_per_row)
    max_rows = max(sublane_align, (max_rows // sublane_align) * sublane_align)
    row_tile = _largest_aligned_divisor(R_pad, sublane_align, max_rows)
    if row_tile is None:
        row_tile = R_pad  # full extent is always a legal block

    # v7x has 2 TensorCores: avoid a degenerate single-step grid for
    # non-trivial inputs so both cores get a share of the HBM traffic.
    if "v7" in kind:
        total_bytes = R_pad * L_pad * itemsize
        if (R_pad // row_tile) * (L_pad // col_tile) == 1 and total_bytes >= (1 << 20):
            half = _largest_aligned_divisor(R_pad, sublane_align, R_pad // 2)
            if half is not None:
                row_tile = half

    return row_tile, col_tile


def normalize(x, mean, std, *, donate_input=False):
    """Pallas equivalent of transforms.Normalize on an NCHW batch."""
    N, C, H, W = x.shape
    R, L = N * C, H * W
    x2 = x.reshape(R, L)

    # Per-row (= per (n, c)) fused-multiply-add parameters, kept in f32.
    mean_f32 = jnp.asarray(mean, dtype=jnp.float32).reshape(-1)
    std_f32 = jnp.asarray(std, dtype=jnp.float32).reshape(-1)
    inv = 1.0 / std_f32
    bias = -mean_f32 * inv
    scale_rows = jnp.tile(inv, N).reshape(R, 1)
    bias_rows = jnp.tile(bias, N).reshape(R, 1)

    itemsize = jnp.dtype(x.dtype).itemsize
    # Sub-32-bit dtypes pack along sublanes: align rows to 8 (f32), 16 (bf16),
    # 32 (int8/fp8) so loads/stores stay fully packed.
    sublane_align = max(8, 32 // max(itemsize, 1))

    # Pad both dims so every block is a full, unmasked (sublane, 128) tile.
    # The padded region is sliced away after the call.
    L_pad = max(128, _round_up(L, 128))
    R_pad = max(sublane_align, _round_up(R, sublane_align))
    if (R_pad, L_pad) != (R, L):
        x2 = jnp.pad(x2, ((0, R_pad - R), (0, L_pad - L)))
        scale_rows = jnp.pad(scale_rows, ((0, R_pad - R), (0, 0)))
        bias_rows = jnp.pad(bias_rows, ((0, R_pad - R), (0, 0)))

    kind = _device_kind()
    budget = _tile_budget_bytes(kind)
    row_tile, col_tile = _pick_tiles(R_pad, L_pad, itemsize, sublane_align, budget, kind)
    grid = (R_pad // row_tile, L_pad // col_tile)

    kwargs = {}
    if donate_input:
        # Reuse x2's HBM buffer for the output (caller gives up the input).
        kwargs["input_output_aliases"] = {2: 0}

    out2 = pl.pallas_call(
        _normalize_kernel,
        out_shape=jax.ShapeDtypeStruct((R_pad, L_pad), x.dtype),
        grid=grid,
        in_specs=[
            pl.BlockSpec((row_tile, 1), lambda i, j: (i, 0)),          # 1/std rows
            pl.BlockSpec((row_tile, 1), lambda i, j: (i, 0)),          # -mean/std rows
            pl.BlockSpec((row_tile, col_tile), lambda i, j: (i, j)),   # x
        ],
        out_specs=pl.BlockSpec((row_tile, col_tile), lambda i, j: (i, j)),
        compiler_params=pltpu.CompilerParams(
            dimension_semantics=("parallel", "parallel"),
        ),
        **kwargs,
    )(scale_rows, bias_rows, x2)

    if (R_pad, L_pad) != (R, L):
        out2 = out2[:R, :L]
    return out2.reshape(N, C, H, W)


if __name__ == "__main__":
    key = jax.random.PRNGKey(0)
    N, C, H, W = 2, 4, 16, 16
    x = jax.random.uniform(key, (N, C, H, W), dtype=jnp.float32)

    # Deterministic per-channel normalization parameters (the module __init__
    # takes mean/std lists of length C).
    mean = jnp.array([0.485, 0.456, 0.406, 0.5], dtype=jnp.float32)
    std = jnp.array([0.229, 0.224, 0.225, 0.25], dtype=jnp.float32)

    out = normalize(x, mean, std)
    out = jax.block_until_ready(out)

    # Reference check (plain JAX, same semantics as transforms.Normalize on NCHW).
    ref = (x - mean[None, :, None, None]) / std[None, :, None, None]
    assert out.shape == x.shape and out.dtype == x.dtype
    assert jnp.allclose(out, ref, atol=1e-5, rtol=1e-5)

    # Also exercise a lane-ragged spatial shape (H*W not a multiple of 128)
    # to cover the padding path.
    x7 = jax.random.uniform(jax.random.PRNGKey(1), (2, 4, 7, 7), dtype=jnp.float32)
    out7 = jax.block_until_ready(normalize(x7, mean, std))
    ref7 = (x7 - mean[None, :, None, None]) / std[None, :, None, None]
    assert jnp.allclose(out7, ref7, atol=1e-5, rtol=1e-5)

    print("KERNEL_OK")
</pallas_src>

<mosaic_0001>
module attributes {stable_mosaic.version = 11 : i64} {
  func.func @_normalize_kernel(%arg0: i32, %arg1: i32, %arg2: memref<8x1xf32, #tpu.memory_space<vmem>>, %arg3: memref<8x1xf32, #tpu.memory_space<vmem>>, %arg4: memref<8x256xf32, #tpu.memory_space<vmem>>, %arg5: memref<8x256xf32, #tpu.memory_space<vmem>>) attributes {dimension_semantics = [#tpu.dimension_semantics<parallel>, #tpu.dimension_semantics<parallel>], iteration_bounds = array<i64: 1, 1>, scalar_prefetch = 0 : i64, scratch_operands = 0 : i64, tpu.core_type = #tpu.core_type<tc>, window_params = [{transform_indices = @transform_0, window_bounds = array<i64: 8, 1>}, {transform_indices = @transform_1, window_bounds = array<i64: 8, 1>}, {transform_indices = @transform_2, window_bounds = array<i64: 8, 256>}, {transform_indices = @transform_3, window_bounds = array<i64: 8, 256>}]} {
    %c0 = arith.constant 0 : index
    %c0_0 = arith.constant 0 : index
    %0 = vector.load %arg4[%c0, %c0_0] : memref<8x256xf32, #tpu.memory_space<vmem>>, vector<8x256xf32>
    %c0_1 = arith.constant 0 : index
    %c0_2 = arith.constant 0 : index
    %1 = vector.load %arg2[%c0_1, %c0_2] : memref<8x1xf32, #tpu.memory_space<vmem>>, vector<8x1xf32>
    %2 = vector.broadcast %1 : vector<8x1xf32> to vector<8x256xf32>
    %3 = arith.mulf %0, %2 : vector<8x256xf32>
    %c0_3 = arith.constant 0 : index
    %c0_4 = arith.constant 0 : index
    %4 = vector.load %arg3[%c0_3, %c0_4] : memref<8x1xf32, #tpu.memory_space<vmem>>, vector<8x1xf32>
    %5 = vector.broadcast %4 : vector<8x1xf32> to vector<8x256xf32>
    %6 = arith.addf %3, %5 : vector<8x256xf32>
    %c0_5 = arith.constant 0 : index
    %c0_6 = arith.constant 0 : index
    %7 = vector.load %arg5[%c0_5, %c0_6] : memref<8x256xf32, #tpu.memory_space<vmem>>, vector<8x256xf32>
    tpu.vector_store %arg5[%c0_5, %c0_6], %6 {strides = array<i32>} : memref<8x256xf32, #tpu.memory_space<vmem>>, vector<8x256xf32>,
    return
  }
  func.func @transform_0(%arg0: i32, %arg1: i32) -> (i32, i32) {
    %c0_i32 = arith.constant 0 : i32
    %c0_i32_0 = arith.constant 0 : i32
    return %arg0, %c0_i32 : i32, i32
  }
  func.func @transform_1(%arg0: i32, %arg1: i32) -> (i32, i32) {
    %c0_i32 = arith.constant 0 : i32
    %c0_i32_0 = arith.constant 0 : i32
    return %arg0, %c0_i32 : i32, i32
  }
  func.func @transform_2(%arg0: i32, %arg1: i32) -> (i32, i32) {
    %c0_i32 = arith.constant 0 : i32
    return %arg0, %arg1 : i32, i32
  }
  func.func @transform_3(%arg0: i32, %arg1: i32) -> (i32, i32) {
    %c0_i32 = arith.constant 0 : i32
    return %arg0, %arg1 : i32, i32
  }
}

</mosaic_0001>

<llo_original>
// kernel: tpu_custom_call.1
$region0: #{tpu_custom_call.1}
  #allocation0 [shape = 'u32[]', space=smem, size = 0x4, offset = 0x4, fixed_abs, tag = 'smem constant byte address 0x4 - core index']
  #allocation1 [shape = 'u32[144,128]{1,0:T(1,128)}', space=vmem, size = 0x12000, scoped, tag = 'internal scratch']
  %s0 = inlined_call_operand.vmem [shape: f32[8,1], index: 0, kind: input, shape index: {}]
  %s1 = inlined_call_operand.vmem [shape: f32[8,1], index: 1, kind: input, shape index: {}]
  %s2 = inlined_call_operand.vmem [shape: f32[8,256], index: 2, kind: input, shape index: {}]
  %s3 = inlined_call_operand.hbm [shape: f32[8,256], index: 3, kind: output, shape index: {}]
  %s4 = sld [smem:[#allocation0]]
  $region22: #{tpu_custom_call.1} parent=0
    _
  %s6 = ssub.s32 1, %s4
  %s7 = scalar_select 0, %s6, %s4
  $region1: #{tpu_custom_call.1} parent=0
    #allocation2 [shape = 'u8[8192]{0}', space=vmem, size = 0x2000, scoped, tag = 'output window, operand 0, single buffered']
    #allocation3 [shape = 's32[1]{0}', space=sflag, size = 0x4, scoped, tag = 'scoped memory for tpu_custom_call.1']
    %8 = vsyncpa [#allocation3], 0
    // Predicated region
    $region2: #{tpu_custom_call.1} parent=1 // pred_check
      _
    $region3: #{tpu_custom_call.1} parent=1 // pred_check_branch
      %10 = sbr.rel (0) target = $region5
    $region4: #{tpu_custom_call.1} parent=1 // pred_region
      _
    $region5: #{tpu_custom_call.1} parent=1 // pred_fallthru
      _
    // Predicated region
    $region6: #{tpu_custom_call.1} parent=1 // pred_check
      _
    $region7: #{tpu_custom_call.1} parent=1 // pred_check_branch
      %12 = sbr.rel (0) target = $region9
    $region8: #{tpu_custom_call.1} parent=1 // pred_region
      _
    $region9: #{tpu_custom_call.1} parent=1 // pred_fallthru
      _
    // Predicated region
    $region10: #{tpu_custom_call.1} parent=1 // pred_check
      _
    $region11: #{tpu_custom_call.1} parent=1 // pred_check_branch
      %14 = sbr.rel (0) target = $region13
    $region12: #{tpu_custom_call.1} parent=1 // pred_region
      _
    $region13: #{tpu_custom_call.1} parent=1 // pred_fallthru
      _
    %v15 = vld [vmem:[%s2] sm:$0xff]
    %v16 = vld [vmem:[%s2 + $0x8] sm:$0xff]
    %v17 = vld [vmem:[%s0] sm:$0xff]
    %19 = vset.pattern.permute.xlu0 0
    %20 = vperm.xlu0 %19, %v17
    %v21 = vpop.permute.xlu0 %20
    %v23 = vmul.f32 %v15, %v21
    %v24 = vmul.f32 %v16, %v21
    %v25 = vld [vmem:[%s1] sm:$0xff]
    %27 = vset.pattern.permute.xlu0 0
    %28 = vperm.xlu0 %27, %v25
    %v29 = vpop.permute.xlu0 %28
    %v31 = vadd.f32 %v23, %v29
    %v32 = vadd.f32 %v24, %v29
    %33 = vst [vmem:[#allocation2] sm:$0xff] %v31
    %34 = vst [vmem:[#allocation2 + $0x8] sm:$0xff] %v32
    // Predicated region
    $region14: #{tpu_custom_call.1} parent=1 // pred_check
      _
    $region15: #{tpu_custom_call.1} parent=1 // pred_check_branch
      %36 = sbr.rel (0) target = $region17
    $region16: #{tpu_custom_call.1} parent=1 // pred_region
      %s38 = ssub.s32 256, 256
      %39 = vsyncadd [#allocation3], %s38
      %s41 = sshll.u32 [#allocation2], 4
      %s42 = int_to_ptr.vmem [resolvable:$true] %s41
      %44 = dma.vmem_to_hbm [thread:$0]  %s42, 256, %s3, [#allocation3]
    $region17: #{tpu_custom_call.1} parent=1 // pred_fallthru
      _
    // Predicated region
    $region18: #{tpu_custom_call.1} parent=1 // pred_check
      _
    $region19: #{tpu_custom_call.1} parent=1 // pred_check_branch
      %46 = sbr.rel (0) target = $region21
    $region20: #{tpu_custom_call.1} parent=1 // pred_region
      %47 = dma.done [#allocation3], 256
    $region21: #{tpu_custom_call.1} parent=1 // pred_fallthru
      _
    %48 = vsyncpa [#allocation3], 1

</llo_original>
